<compile_context>
chip_gen: v5e
topology: v5e:2x2
jax: 0.10.0
libtpu: 0.0.40
codegen_flags: <defaults>
</compile_context>

<pallas_src>
import jax
import jax.numpy as jnp
from jax.experimental import pallas as pl
from jax.experimental.pallas import tpu as pltpu


def _round_up(v, m):
    return ((v + m - 1) // m) * m


def _mlp_kernel(x_ref, w1_ref, b1_ref, w2_ref, b2_ref, o_ref):
    # x_ref : (TB, D_in)      VMEM, pipelined over batch tiles
    # w1_ref: (D_in, H_pad)   VMEM, resident (constant index_map)
    # b1_ref: (1, H_pad)      VMEM, resident
    # w2_ref: (H_pad, A_pad)  VMEM, resident
    # b2_ref: (1, A_pad)      VMEM, resident
    # o_ref : (TB, A_pad)     VMEM, pipelined, lane-dense store
    x = x_ref[...].astype(w1_ref.dtype)  # bf16 MXU operands if params are bf16
    h = jnp.dot(x, w1_ref[...], preferred_element_type=jnp.float32)
    h = jnp.maximum(h + b1_ref[...].astype(jnp.float32), 0.0)
    y = jnp.dot(h.astype(w2_ref.dtype), w2_ref[...],
                preferred_element_type=jnp.float32)
    y = y + b2_ref[...].astype(jnp.float32)
    o_ref[...] = y.astype(o_ref.dtype)


def prepare_params(w1, b1, w2, b2, *, mxu_dtype=None):
    """One-time parameter prep (hoisted out of the per-call hot path).

    Pads hidden/action dims to lane multiples (128) and optionally casts the
    weights to bf16 for the MXU (accumulation stays f32 in-kernel). The input
    dim D_in is left unpadded: the x block's minor dim equals the full array
    dim, which the (8,128) rule allows, so x never needs column padding.
    """
    D_in, H = w1.shape
    A = w2.shape[1]
    H_pad = _round_up(H, 128)
    A_pad = _round_up(A, 128)
    wdt = w1.dtype if mxu_dtype is None else mxu_dtype
    w1p = jnp.zeros((D_in, H_pad), wdt).at[:, :H].set(w1.astype(wdt))
    b1p = jnp.zeros((1, H_pad), wdt).at[0, :H].set(b1.astype(wdt))
    w2p = jnp.zeros((H_pad, A_pad), wdt).at[:H, :A].set(w2.astype(wdt))
    b2p = jnp.zeros((1, A_pad), wdt).at[0, :A].set(b2.astype(wdt))
    return {"w1": w1p, "b1": b1p, "w2": w2p, "b2": b2p, "dims": (D_in, H, A)}


def simple_network_forward(x, params, *, block_b=512,
                           vmem_limit_bytes=48 * 1024 * 1024):
    """Fused forward of SimpleNetwork: relu(x @ w1 + b1) @ w2 + b2."""
    w1p, b1p, w2p, b2p = params["w1"], params["b1"], params["w2"], params["b2"]
    D_in, H, A = params["dims"]
    B = x.shape[0]
    assert x.shape[1] == D_in
    H_pad, A_pad = w1p.shape[1], w2p.shape[1]
    out_dtype = x.dtype
    x_bytes = jnp.dtype(x.dtype).itemsize
    w_bytes = jnp.dtype(w1p.dtype).itemsize

    # ---- batch tiling: balanced tiles, >=2 tiles when possible (v7x megacore) ----
    num_tiles = max(1, pl.cdiv(B, block_b))
    if B >= 16:
        num_tiles = max(num_tiles, 2)
    TB = _round_up(pl.cdiv(B, num_tiles), 8)

    # Conservative per-TensorCore VMEM budget (assume double-buffered weights).
    weight_footprint = (D_in * H_pad + H_pad * A_pad + H_pad + A_pad) * w_bytes
    row_bytes = 2 * (D_in + A_pad) * x_bytes + (H_pad + A_pad) * 4
    budget = vmem_limit_bytes - 2 * weight_footprint - 8 * 1024 * 1024
    tb_cap = max(8, (budget // max(row_bytes, 1)) // 8 * 8)
    # TODO(synk): if the weights alone exceed the VMEM budget, add a K/N-tiled
    # grid fallback with an f32 accumulator and pl.when init/finalize.
    TB = min(TB, tb_cap)
    num_tiles = max(1, pl.cdiv(B, TB))
    TB = _round_up(pl.cdiv(B, num_tiles), 8)
    B_pad = TB * num_tiles

    # Per-call input prep: only (maybe) row-pad x; feature dim stays at D_in.
    xp = x if B_pad == B else jnp.pad(x, ((0, B_pad - B), (0, 0)))

    cost = pl.CostEstimate(
        flops=2 * B_pad * (D_in * H_pad + H_pad * A_pad),
        transcendentals=0,
        bytes_accessed=(B_pad * D_in + B_pad * A_pad) * x_bytes + weight_footprint,
    )

    def _run(single_buffer_weights):
        def _wspec(shape):
            if single_buffer_weights:
                # Resident operand (constant index_map): one buffer is enough.
                return pl.BlockSpec(shape, lambda i: (0, 0),
                                    pipeline_mode=pl.Buffered(1))
            return pl.BlockSpec(shape, lambda i: (0, 0))

        return pl.pallas_call(
            _mlp_kernel,
            out_shape=jax.ShapeDtypeStruct((B_pad, A_pad), out_dtype),
            grid_spec=pltpu.PrefetchScalarGridSpec(
                num_scalar_prefetch=0,
                grid=(num_tiles,),
                in_specs=[
                    pl.BlockSpec((TB, D_in), lambda i: (i, 0)),   # x: batch-tiled
                    _wspec((D_in, H_pad)),                        # w1: resident
                    _wspec((1, H_pad)),                           # b1: resident
                    _wspec((H_pad, A_pad)),                       # w2: resident
                    _wspec((1, A_pad)),                           # b2: resident
                ],
                out_specs=pl.BlockSpec((TB, A_pad), lambda i: (i, 0)),
            ),
            compiler_params=pltpu.CompilerParams(
                dimension_semantics=("parallel",),
                vmem_limit_bytes=vmem_limit_bytes,
            ),
            cost_estimate=cost,
        )(xp, w1p, b1p, w2p, b2p)

    try:
        out_padded = _run(True)
    except Exception:
        # pl.Buffered / pipeline_mode unavailable or rejected: default buffering.
        out_padded = _run(False)

    return out_padded[:B, :A]


def init_params(key, input_dim, fc1_dim, n_action, dtype=jnp.float32):
    """Deterministic init mimicking nn.Linear default (uniform +/- 1/sqrt(fan_in))."""
    k1, k2, k3, k4 = jax.random.split(key, 4)
    bound1 = 1.0 / jnp.sqrt(input_dim)
    bound2 = 1.0 / jnp.sqrt(fc1_dim)
    # stored as (in, out) == transpose of PyTorch's (out, in)
    w1 = jax.random.uniform(k1, (input_dim, fc1_dim), dtype, -bound1, bound1)
    b1 = jax.random.uniform(k2, (fc1_dim,), dtype, -bound1, bound1)
    w2 = jax.random.uniform(k3, (fc1_dim, n_action), dtype, -bound2, bound2)
    b2 = jax.random.uniform(k4, (n_action,), dtype, -bound2, bound2)
    return w1, b1, w2, b2


if __name__ == "__main__":
    # Small shapes consistent with the module's forward:
    # state: (batch, input_dim); network: input_dim -> fc1_dim -> n_action.
    # NOTE: fc2_dim/fc3_dim/fc4_dim in __init__ are unused by the forward pass.
    batch, input_dim, fc1_dim, n_action = 8, 32, 64, 16

    key = jax.random.PRNGKey(0)
    k_x, k_p = jax.random.split(key)
    x = jax.random.normal(k_x, (batch, input_dim), jnp.float32)
    w1, b1, w2, b2 = init_params(k_p, input_dim, fc1_dim, n_action)

    # Pure-JAX reference
    ref = jnp.maximum(x @ w1 + b1, 0.0) @ w2 + b2

    # f32 MXU path: exact vs. reference.
    params_f32 = prepare_params(w1, b1, w2, b2)
    out = jax.block_until_ready(simple_network_forward(x, params_f32))
    assert out.shape == (batch, n_action)
    assert jnp.allclose(out, ref, atol=1e-5, rtol=1e-5)

    # bf16-MXU path (perf feedback): bf16 operands, f32 accumulation.
    params_bf16 = prepare_params(w1, b1, w2, b2, mxu_dtype=jnp.bfloat16)
    out_bf16 = jax.block_until_ready(simple_network_forward(x, params_bf16))
    assert out_bf16.shape == (batch, n_action)
    assert jnp.allclose(out_bf16, ref, atol=1e-1, rtol=1e-1)

    print("KERNEL_OK")
</pallas_src>

<mosaic_0001>
module attributes {stable_mosaic.version = 11 : i64} {
  func.func @_mlp_kernel(%arg0: i32, %arg1: memref<8x32xf32, #tpu.memory_space<vmem>>, %arg2: memref<32x128xf32, #tpu.memory_space<vmem>>, %arg3: memref<1x128xf32, #tpu.memory_space<vmem>>, %arg4: memref<128x128xf32, #tpu.memory_space<vmem>>, %arg5: memref<1x128xf32, #tpu.memory_space<vmem>>, %arg6: memref<8x128xf32, #tpu.memory_space<vmem>>) attributes {dimension_semantics = [#tpu.dimension_semantics<parallel>], iteration_bounds = array<i64: 1>, scalar_prefetch = 0 : i64, scratch_operands = 0 : i64, tpu.core_type = #tpu.core_type<tc>, window_params = [{transform_indices = @transform_0, window_bounds = array<i64: 8, 32>}, {pipeline_mode = #tpu.pipeline_mode<synchronous>, transform_indices = @transform_1, window_bounds = array<i64: 32, 128>}, {pipeline_mode = #tpu.pipeline_mode<synchronous>, transform_indices = @transform_2, window_bounds = array<i64: 1, 128>}, {pipeline_mode = #tpu.pipeline_mode<synchronous>, transform_indices = @transform_3, window_bounds = array<i64: 128, 128>}, {pipeline_mode = #tpu.pipeline_mode<synchronous>, transform_indices = @transform_4, window_bounds = array<i64: 1, 128>}, {transform_indices = @transform_5, window_bounds = array<i64: 8, 128>}]} {
    %c0 = arith.constant 0 : index
    %c0_0 = arith.constant 0 : index
    %0 = vector.load %arg1[%c0, %c0_0] : memref<8x32xf32, #tpu.memory_space<vmem>>, vector<8x32xf32>
    %c0_1 = arith.constant 0 : index
    %c0_2 = arith.constant 0 : index
    %1 = vector.load %arg2[%c0_1, %c0_2] : memref<32x128xf32, #tpu.memory_space<vmem>>, vector<32x128xf32>
    %cst = arith.constant dense<0.000000e+00> : vector<8x128xf32>
    %2 = tpu.matmul %0, %1, %cst {dimension_numbers = #tpu.dot_dimension_numbers<[1], [0], [0], [1], [0, 0, 1, 1], [], []>} : vector<8x32xf32>, vector<32x128xf32>, vector<8x128xf32> -> vector<8x128xf32>
    %c0_3 = arith.constant 0 : index
    %c0_4 = arith.constant 0 : index
    %3 = vector.load %arg3[%c0_3, %c0_4] : memref<1x128xf32, #tpu.memory_space<vmem>>, vector<1x128xf32>
    %4 = vector.broadcast %3 : vector<1x128xf32> to vector<8x128xf32>
    %5 = arith.addf %2, %4 : vector<8x128xf32>
    %cst_5 = arith.constant 0.000000e+00 : f32
    %6 = vector.broadcast %cst_5 : f32 to vector<8x128xf32>
    %7 = arith.maximumf %5, %6 : vector<8x128xf32>
    %c0_6 = arith.constant 0 : index
    %c0_7 = arith.constant 0 : index
    %8 = vector.load %arg4[%c0_6, %c0_7] : memref<128x128xf32, #tpu.memory_space<vmem>>, vector<128x128xf32>
    %cst_8 = arith.constant dense<0.000000e+00> : vector<8x128xf32>
    %9 = tpu.matmul %7, %8, %cst_8 {dimension_numbers = #tpu.dot_dimension_numbers<[1], [0], [0], [1], [0, 0, 1, 1], [], []>} : vector<8x128xf32>, vector<128x128xf32>, vector<8x128xf32> -> vector<8x128xf32>
    %c0_9 = arith.constant 0 : index
    %c0_10 = arith.constant 0 : index
    %10 = vector.load %arg5[%c0_9, %c0_10] : memref<1x128xf32, #tpu.memory_space<vmem>>, vector<1x128xf32>
    %11 = vector.broadcast %10 : vector<1x128xf32> to vector<8x128xf32>
    %12 = arith.addf %9, %11 : vector<8x128xf32>
    %c0_11 = arith.constant 0 : index
    %c0_12 = arith.constant 0 : index
    %13 = vector.load %arg6[%c0_11, %c0_12] : memref<8x128xf32, #tpu.memory_space<vmem>>, vector<8x128xf32>
    tpu.vector_store %arg6[%c0_11, %c0_12], %12 {strides = array<i32>} : memref<8x128xf32, #tpu.memory_space<vmem>>, vector<8x128xf32>,
    return
  }
  func.func @transform_0(%arg0: i32) -> (i32, i32) {
    %c0_i32 = arith.constant 0 : i32
    %c0_i32_0 = arith.constant 0 : i32
    return %arg0, %c0_i32 : i32, i32
  }
  func.func @transform_1(%arg0: i32) -> (i32, i32) {
    %c0_i32 = arith.constant 0 : i32
    %c0_i32_0 = arith.constant 0 : i32
    %c0_i32_1 = arith.constant 0 : i32
    return %c0_i32, %c0_i32_0 : i32, i32
  }
  func.func @transform_2(%arg0: i32) -> (i32, i32) {
    %c0_i32 = arith.constant 0 : i32
    %c0_i32_0 = arith.constant 0 : i32
    %c0_i32_1 = arith.constant 0 : i32
    return %c0_i32, %c0_i32_0 : i32, i32
  }
  func.func @transform_3(%arg0: i32) -> (i32, i32) {
    %c0_i32 = arith.constant 0 : i32
    %c0_i32_0 = arith.constant 0 : i32
    %c0_i32_1 = arith.constant 0 : i32
    return %c0_i32, %c0_i32_0 : i32, i32
  }
  func.func @transform_4(%arg0: i32) -> (i32, i32) {
    %c0_i32 = arith.constant 0 : i32
    %c0_i32_0 = arith.constant 0 : i32
    %c0_i32_1 = arith.constant 0 : i32
    return %c0_i32, %c0_i32_0 : i32, i32
  }
  func.func @transform_5(%arg0: i32) -> (i32, i32) {
    %c0_i32 = arith.constant 0 : i32
    %c0_i32_0 = arith.constant 0 : i32
    return %arg0, %c0_i32 : i32, i32
  }
}

module attributes {stable_mosaic.version = 11 : i64} {
  func.func @_mlp_kernel(%arg0: i32, %arg1: memref<8x32xf32, #tpu.memory_space<vmem>>, %arg2: memref<32x128xf32, #tpu.memory_space<vmem>>, %arg3: memref<1x128xf32, #tpu.memory_space<vmem>>, %arg4: memref<128x128xf32, #tpu.memory_space<vmem>>, %arg5: memref<1x128xf32, #tpu.memory_space<vmem>>, %arg6: memref<8x128xf32, #tpu.memory_space<vmem>>) attributes {dimension_semantics = [#tpu.dimension_semantics<parallel>], iteration_bounds = array<i64: 1>, scalar_prefetch = 0 : i64, scratch_operands = 0 : i64, tpu.core_type = #tpu.core_type<tc>, window_params = [{transform_indices = @transform_0, window_bounds = array<i64: 8, 32>}, {pipeline_mode = #tpu.pipeline_mode<synchronous>, transform_indices = @transform_1, window_bounds = array<i64: 32, 128>}, {pipeline_mode = #tpu.pipeline_mode<synchronous>, transform_indices = @transform_2, window_bounds = array<i64: 1, 128>}, {pipeline_mode = #tpu.pipeline_mode<synchronous>, transform_indices = @transform_3, window_bounds = array<i64: 128, 128>}, {pipeline_mode = #tpu.pipeline_mode<synchronous>, transform_indices = @transform_4, window_bounds = array<i64: 1, 128>}, {transform_indices = @transform_5, window_bounds = array<i64: 8, 128>}]} {
    %c0 = arith.constant 0 : index
    %c0_0 = arith.constant 0 : index
    %0 = vector.load %arg1[%c0, %c0_0] : memref<8x32xf32, #tpu.memory_space<vmem>>, vector<8x32xf32>
    %c0_1 = arith.constant 0 : index
    %c0_2 = arith.constant 0 : index
    %1 = vector.load %arg2[%c0_1, %c0_2] : memref<32x128xf32, #tpu.memory_space<vmem>>, vector<32x128xf32>
    %cst = arith.constant dense<0.000000e+00> : vector<8x128xf32>
    %2 = tpu.matmul %0, %1, %cst {dimension_numbers = #tpu.dot_dimension_numbers<[1], [0], [0], [1], [0, 0, 1, 1], [], []>} : vector<8x32xf32>, vector<32x128xf32>, vector<8x128xf32> -> vector<8x128xf32>
    %c0_3 = arith.constant 0 : index
    %c0_4 = arith.constant 0 : index
    %3 = vector.load %arg3[%c0_3, %c0_4] : memref<1x128xf32, #tpu.memory_space<vmem>>, vector<1x128xf32>
    %4 = vector.broadcast %3 : vector<1x128xf32> to vector<8x128xf32>
    %5 = arith.addf %2, %4 : vector<8x128xf32>
    %cst_5 = arith.constant 0.000000e+00 : f32
    %6 = vector.broadcast %cst_5 : f32 to vector<8x128xf32>
    %7 = arith.maximumf %5, %6 : vector<8x128xf32>
    %c0_6 = arith.constant 0 : index
    %c0_7 = arith.constant 0 : index
    %8 = vector.load %arg4[%c0_6, %c0_7] : memref<128x128xf32, #tpu.memory_space<vmem>>, vector<128x128xf32>
    %cst_8 = arith.constant dense<0.000000e+00> : vector<8x128xf32>
    %9 = tpu.matmul %7, %8, %cst_8 {dimension_numbers = #tpu.dot_dimension_numbers<[1], [0], [0], [1], [0, 0, 1, 1], [], []>} : vector<8x128xf32>, vector<128x128xf32>, vector<8x128xf32> -> vector<8x128xf32>
    %c0_9 = arith.constant 0 : index
    %c0_10 = arith.constant 0 : index
    %10 = vector.load %arg5[%c0_9, %c0_10] : memref<1x128xf32, #tpu.memory_space<vmem>>, vector<1x128xf32>
    %11 = vector.broadcast %10 : vector<1x128xf32> to vector<8x128xf32>
    %12 = arith.addf %9, %11 : vector<8x128xf32>
    %c0_11 = arith.constant 0 : index
    %c0_12 = arith.constant 0 : index
    %13 = vector.load %arg6[%c0_11, %c0_12] : memref<8x128xf32, #tpu.memory_space<vmem>>, vector<8x128xf32>
    tpu.vector_store %arg6[%c0_11, %c0_12], %12 {strides = array<i32>} : memref<8x128xf32, #tpu.memory_space<vmem>>, vector<8x128xf32>,
    return
  }
  func.func @transform_0(%arg0: i32) -> (i32, i32) {
    %c0_i32 = arith.constant 0 : i32
    %c0_i32_0 = arith.constant 0 : i32
    return %arg0, %c0_i32 : i32, i32
  }
  func.func @transform_1(%arg0: i32) -> (i32, i32) {
    %c0_i32 = arith.constant 0 : i32
    %c0_i32_0 = arith.constant 0 : i32
    %c0_i32_1 = arith.constant 0 : i32
    return %c0_i32, %c0_i32_0 : i32, i32
  }
  func.func @transform_2(%arg0: i32) -> (i32, i32) {
    %c0_i32 = arith.constant 0 : i32
    %c0_i32_0 = arith.constant 0 : i32
    %c0_i32_1 = arith.constant 0 : i32
    return %c0_i32, %c0_i32_0 : i32, i32
  }
  func.func @transform_3(%arg0: i32) -> (i32, i32) {
    %c0_i32 = arith.constant 0 : i32
    %c0_i32_0 = arith.constant 0 : i32
    %c0_i32_1 = arith.constant 0 : i32
    return %c0_i32, %c0_i32_0 : i32, i32
  }
  func.func @transform_4(%arg0: i32) -> (i32, i32) {
    %c0_i32 = arith.constant 0 : i32
    %c0_i32_0 = arith.constant 0 : i32
    %c0_i32_1 = arith.constant 0 : i32
    return %c0_i32, %c0_i32_0 : i32, i32
  }
  func.func @transform_5(%arg0: i32) -> (i32, i32) {
    %c0_i32 = arith.constant 0 : i32
    %c0_i32_0 = arith.constant 0 : i32
    return %arg0, %c0_i32 : i32, i32
  }
}

</mosaic_0001>

<llo_original>
// kernel: tpu_custom_call.1
$region0: #{tpu_custom_call.1}
  #allocation0 [shape = 'u32[]', space=smem, size = 0x4, offset = 0x4, fixed_abs, tag = 'smem constant byte address 0x4 - core index']
  #allocation1 [shape = 'u32[72,128]{1,0:T(1,128)}', space=vmem, size = 0x9000, scoped, tag = 'internal scratch']
  %s0 = inlined_call_operand.hbm [shape: f32[8,32], index: 0, kind: input, shape index: {}]
  %s1 = inlined_call_operand.hbm [shape: f32[32,128], index: 1, kind: input, shape index: {}]
  %s2 = inlined_call_operand.vmem [shape: f32[1,128], index: 2, kind: input, shape index: {}]
  %s3 = inlined_call_operand.hbm [shape: f32[128,128], index: 3, kind: input, shape index: {}]
  %s4 = inlined_call_operand.vmem [shape: f32[1,128], index: 4, kind: input, shape index: {}]
  %s5 = inlined_call_operand.hbm [shape: f32[8,128], index: 5, kind: output, shape index: {}]
  %s6 = sld [smem:[#allocation0]]
  $region42: #{tpu_custom_call.1} parent=0
    _
  %s8 = ssub.s32 1, %s6
  %s9 = scalar_select 0, %s8, %s6
  $region1: #{tpu_custom_call.1} parent=0
    #allocation2 [shape = 'u8[4096]{0}', space=vmem, size = 0x1000, scoped, tag = 'input window, operand 0, single buffered']
    #allocation3 [shape = 's32[1]{0}', space=sflag, size = 0x4, scoped, tag = 'scoped memory for tpu_custom_call.1']
    #allocation4 [shape = 's32[1]{0}', space=sflag, size = 0x4, scoped, tag = 'scoped memory for tpu_custom_call.1']
    #allocation5 [shape = 'u8[16384]{0}', space=vmem, size = 0x4000, scoped, tag = 'input window, operand 1, single buffered']
    #allocation6 [shape = 's32[1]{0}', space=sflag, size = 0x4, scoped, tag = 'scoped memory for tpu_custom_call.1']
    #allocation7 [shape = 'u8[65536]{0}', space=vmem, size = 0x10000, scoped, tag = 'input window, operand 3, single buffered']
    #allocation8 [shape = 'u8[4096]{0}', space=vmem, size = 0x1000, scoped, tag = 'output window, operand 0, single buffered']
    %10 = vsyncpa [#allocation3], 0
    %11 = vsyncpa [#allocation6], 0
    %12 = vsyncpa [#allocation4], 0
    // Predicated region
    $region2: #{tpu_custom_call.1} parent=1 // pred_check
      _
    $region3: #{tpu_custom_call.1} parent=1 // pred_check_branch
      %14 = sbr.rel (0) target = $region5
    $region4: #{tpu_custom_call.1} parent=1 // pred_region
      %16 = vsyncadd [#allocation3], 0
      %s18 = sshll.u32 %s0, 4
      %s19 = int_to_ptr.hbm [resolvable:$true] %s18
      %s20 = sshll.u32 [#allocation2], 4
      %s21 = int_to_ptr.vmem [resolvable:$true] %s20
      %23 = dma.hbm_to_vmem [thread:$0]  %s19, 128, %s21, [#allocation3]
    $region5: #{tpu_custom_call.1} parent=1 // pred_fallthru
      _
    // Predicated region
    $region6: #{tpu_custom_call.1} parent=1 // pred_check
      _
    $region7: #{tpu_custom_call.1} parent=1 // pred_check_branch
      %25 = sbr.rel (0) target = $region9
    $region8: #{tpu_custom_call.1} parent=1 // pred_region
      %27 = vsyncadd [#allocation6], 0
      %s28 = sshll.u32 %s1, 4
      %s29 = int_to_ptr.hbm [resolvable:$true] %s28
      %s30 = sshll.u32 [#allocation5], 4
      %s31 = int_to_ptr.vmem [resolvable:$true] %s30
      %36 = dma.hbm_to_vmem [thread:$0]  %s29, 512, %s31, [#allocation6], 128, 128, 8
    $region9: #{tpu_custom_call.1} parent=1 // pred_fallthru
      _
    // Predicated region
    $region10: #{tpu_custom_call.1} parent=1 // pred_check
      _
    $region11: #{tpu_custom_call.1} parent=1 // pred_check_branch
      %38 = sbr.rel (0) target = $region13
    $region12: #{tpu_custom_call.1} parent=1 // pred_region
      _
    $region13: #{tpu_custom_call.1} parent=1 // pred_fallthru
      _
    // Predicated region
    $region14: #{tpu_custom_call.1} parent=1 // pred_check
      _
    $region15: #{tpu_custom_call.1} parent=1 // pred_check_branch
      %40 = sbr.rel (0) target = $region17
    $region16: #{tpu_custom_call.1} parent=1 // pred_region
      %42 = vsyncadd [#allocation6], 0
      %s43 = sshll.u32 %s3, 4
      %s44 = int_to_ptr.hbm [resolvable:$true] %s43
      %s45 = sshll.u32 [#allocation7], 4
      %s46 = int_to_ptr.vmem [resolvable:$true] %s45
      %51 = dma.hbm_to_vmem [thread:$0]  %s44, 2048, %s46, [#allocation6], 128, 128, 8
    $region17: #{tpu_custom_call.1} parent=1 // pred_fallthru
      _
    // Predicated region
    $region18: #{tpu_custom_call.1} parent=1 // pred_check
      _
    $region19: #{tpu_custom_call.1} parent=1 // pred_check_branch
      %53 = sbr.rel (0) target = $region21
    $region20: #{tpu_custom_call.1} parent=1 // pred_region
      _
    $region21: #{tpu_custom_call.1} parent=1 // pred_fallthru
      _
    // Predicated region
    $region22: #{tpu_custom_call.1} parent=1 // pred_check
      _
    $region23: #{tpu_custom_call.1} parent=1 // pred_check_branch
      %55 = sbr.rel (0) target = $region25
    $region24: #{tpu_custom_call.1} parent=1 // pred_region
      %57 = dma.done [#allocation3], 128
    $region25: #{tpu_custom_call.1} parent=1 // pred_fallthru
      _
    // Predicated region
    $region26: #{tpu_custom_call.1} parent=1 // pred_check
      _
    $region27: #{tpu_custom_call.1} parent=1 // pred_check_branch
      %59 = sbr.rel (0) target = $region29
    $region28: #{tpu_custom_call.1} parent=1 // pred_region
      %61 = dma.done [#allocation6], 512
    $region29: #{tpu_custom_call.1} parent=1 // pred_fallthru
      _
    // Predicated region
    $region30: #{tpu_custom_call.1} parent=1 // pred_check
      _
    $region31: #{tpu_custom_call.1} parent=1 // pred_check_branch
      %63 = sbr.rel (0) target = $region33
    $region32: #{tpu_custom_call.1} parent=1 // pred_region
      %65 = dma.done [#allocation6], 2048
    $region33: #{tpu_custom_call.1} parent=1 // pred_fallthru
      _
    %v66 = vld [vmem:[#allocation2] sm:$0xff]
    %v67 = vld [vmem:[#allocation5] sm:$0xff]
    %v68 = vld [vmem:[#allocation5 + $0x8] sm:$0xff]
    %v69 = vld [vmem:[#allocation5 + $0x10] sm:$0xff]
    %v70 = vld [vmem:[#allocation5 + $0x18] sm:$0xff]
    %v71 = vld [vmem:[%s2] sm:$0x1]
    %v73 = vperm.slane %v71, 0
    %vm75 = vcmask 261120
    %v77 = vsel %vm75, %v66, 0
    %79 = vmatpush.msra.mxu0 0.0
    %80 = vmatpush.msra.mxu0 0.0
    %81 = vmatpush.msra.mxu0 0.0
    %82 = vmatpush.msra.mxu0 0.0
    %83 = vmatpush.msra.mxu0 0.0
    %84 = vmatpush.msra.mxu0 0.0
    %85 = vmatpush.msra.mxu0 0.0
    %86 = vmatpush.msra.mxu0 0.0
    %87 = vmatpush.msra.mxu0 0.0
    %88 = vmatpush.msra.mxu0 0.0
    %89 = vmatpush.msra.mxu0 0.0
    %90 = vmatpush.msra.mxu0 0.0
    %91 = vmatpush.msra.mxu0 %v70
    %92 = vmatpush.msra.mxu0 %v69
    %93 = vmatpush.msra.mxu0 %v68
    %94 = vmatpush.msra.mxu0 %v67
    %95 = vmatmul.f32.gmra.mxu0 %v77
    %v96 = vpop.f32.mrf.mxu0
    %v97 = vadd.f32 %v73, %v96
    %98 = vdwg.mxu0
    %v99 = vmax.f32 %v97, 0.0
    %v100 = vld [vmem:[#allocation7] sm:$0xff]
    %v101 = vld [vmem:[#allocation7 + $0x8] sm:$0xff]
    %v102 = vld [vmem:[#allocation7 + $0x10] sm:$0xff]
    %v103 = vld [vmem:[#allocation7 + $0x18] sm:$0xff]
    %v104 = vld [vmem:[#allocation7 + $0x20] sm:$0xff]
    %v105 = vld [vmem:[#allocation7 + $0x28] sm:$0xff]
    %v106 = vld [vmem:[#allocation7 + $0x30] sm:$0xff]
    %v107 = vld [vmem:[#allocation7 + $0x38] sm:$0xff]
    %v108 = vld [vmem:[#allocation7 + $0x40] sm:$0xff]
    %v109 = vld [vmem:[#allocation7 + $0x48] sm:$0xff]
    %v110 = vld [vmem:[#allocation7 + $0x50] sm:$0xff]
    %v111 = vld [vmem:[#allocation7 + $0x58] sm:$0xff]
    %v112 = vld [vmem:[#allocation7 + $0x60] sm:$0xff]
    %v113 = vld [vmem:[#allocation7 + $0x68] sm:$0xff]
    %v114 = vld [vmem:[#allocation7 + $0x70] sm:$0xff]
    %v115 = vld [vmem:[#allocation7 + $0x78] sm:$0xff]
    %v116 = vld [vmem:[%s4] sm:$0x1]
    %v118 = vperm.slane %v116, 0
    %120 = vmatpush.msra.mxu0 %v115
    %121 = vmatpush.msra.mxu0 %v114
    %122 = vmatpush.msra.mxu0 %v113
    %123 = vmatpush.msra.mxu0 %v112
    %124 = vmatpush.msra.mxu0 %v111
    %125 = vmatpush.msra.mxu0 %v110
    %126 = vmatpush.msra.mxu0 %v109
    %127 = vmatpush.msra.mxu0 %v108
    %128 = vmatpush.msra.mxu0 %v107
    %129 = vmatpush.msra.mxu0 %v106
    %130 = vmatpush.msra.mxu0 %v105
    %131 = vmatpush.msra.mxu0 %v104
    %132 = vmatpush.msra.mxu0 %v103
    %133 = vmatpush.msra.mxu0 %v102
    %134 = vmatpush.msra.mxu0 %v101
    %135 = vmatpush.msra.mxu0 %v100
    %136 = vmatmul.f32.gmra.mxu0 %v99
    %v137 = vpop.f32.mrf.mxu0
    %v138 = vadd.f32 %v118, %v137
    %139 = vdwg.mxu0
    %140 = vst [vmem:[#allocation8] sm:$0xff] %v138
    // Predicated region
    $region34: #{tpu_custom_call.1} parent=1 // pred_check
      _
    $region35: #{tpu_custom_call.1} parent=1 // pred_check_branch
      %142 = sbr.rel (0) target = $region37
    $region36: #{tpu_custom_call.1} parent=1 // pred_region
      %144 = vsyncadd [#allocation4], 0
      %s146 = sshll.u32 [#allocation8], 4
      %s147 = int_to_ptr.vmem [resolvable:$true] %s146
      %s148 = sshll.u32 %s5, 4
      %s149 = int_to_ptr.hbm [resolvable:$true] %s148
      %151 = dma.vmem_to_hbm [thread:$0]  %s147, 128, %s149, [#allocation4]
    $region37: #{tpu_custom_call.1} parent=1 // pred_fallthru
      _
    // Predicated region
    $region38: #{tpu_custom_call.1} parent=1 // pred_check
      _
    $region39: #{tpu_custom_call.1} parent=1 // pred_check_branch
      %153 = sbr.rel (0) target = $region41
    $region40: #{tpu_custom_call.1} parent=1 // pred_region
      %155 = dma.done [#allocation4], 128
    $region41: #{tpu_custom_call.1} parent=1 // pred_fallthru
      _
    %156 = vsyncpa [#allocation3], 1
    %157 = vsyncpa [#allocation6], 1
    %158 = vsyncpa [#allocation4], 1

// kernel: tpu_custom_call.1
$region0: #{tpu_custom_call.1}
  #allocation0 [shape = 'u32[]', space=smem, size = 0x4, offset = 0x4, fixed_abs, tag = 'smem constant byte address 0x4 - core index']
  #allocation1 [shape = 'u32[72,128]{1,0:T(1,128)}', space=vmem, size = 0x9000, scoped, tag = 'internal scratch']
  %s0 = inlined_call_operand.hbm [shape: f32[8,32], index: 0, kind: input, shape index: {}]
  %s1 = inlined_call_operand.hbm [shape: f32[32,128], index: 1, kind: input, shape index: {}]
  %s2 = inlined_call_operand.vmem [shape: f32[1,128], index: 2, kind: input, shape index: {}]
  %s3 = inlined_call_operand.hbm [shape: f32[128,128], index: 3, kind: input, shape index: {}]
  %s4 = inlined_call_operand.vmem [shape: f32[1,128], index: 4, kind: input, shape index: {}]
  %s5 = inlined_call_operand.hbm [shape: f32[8,128], index: 5, kind: output, shape index: {}]
  %s6 = sld [smem:[#allocation0]]
  $region42: #{tpu_custom_call.1} parent=0
    _
  %s8 = ssub.s32 1, %s6
  %s9 = scalar_select 0, %s8, %s6
  $region1: #{tpu_custom_call.1} parent=0
    #allocation2 [shape = 'u8[4096]{0}', space=vmem, size = 0x1000, scoped, tag = 'input window, operand 0, single buffered']
    #allocation3 [shape = 's32[1]{0}', space=sflag, size = 0x4, scoped, tag = 'scoped memory for tpu_custom_call.1']
    #allocation4 [shape = 's32[1]{0}', space=sflag, size = 0x4, scoped, tag = 'scoped memory for tpu_custom_call.1']
    #allocation5 [shape = 'u8[16384]{0}', space=vmem, size = 0x4000, scoped, tag = 'input window, operand 1, single buffered']
    #allocation6 [shape = 's32[1]{0}', space=sflag, size = 0x4, scoped, tag = 'scoped memory for tpu_custom_call.1']
    #allocation7 [shape = 'u8[65536]{0}', space=vmem, size = 0x10000, scoped, tag = 'input window, operand 3, single buffered']
    #allocation8 [shape = 'u8[4096]{0}', space=vmem, size = 0x1000, scoped, tag = 'output window, operand 0, single buffered']
    %10 = vsyncpa [#allocation3], 0
    %11 = vsyncpa [#allocation6], 0
    %12 = vsyncpa [#allocation4], 0
    // Predicated region
    $region2: #{tpu_custom_call.1} parent=1 // pred_check
      _
    $region3: #{tpu_custom_call.1} parent=1 // pred_check_branch
      %14 = sbr.rel (0) target = $region5
    $region4: #{tpu_custom_call.1} parent=1 // pred_region
      %16 = vsyncadd [#allocation3], 0
      %s18 = sshll.u32 %s0, 4
      %s19 = int_to_ptr.hbm [resolvable:$true] %s18
      %s20 = sshll.u32 [#allocation2], 4
      %s21 = int_to_ptr.vmem [resolvable:$true] %s20
      %23 = dma.hbm_to_vmem [thread:$0]  %s19, 128, %s21, [#allocation3]
    $region5: #{tpu_custom_call.1} parent=1 // pred_fallthru
      _
    // Predicated region
    $region6: #{tpu_custom_call.1} parent=1 // pred_check
      _
    $region7: #{tpu_custom_call.1} parent=1 // pred_check_branch
      %25 = sbr.rel (0) target = $region9
    $region8: #{tpu_custom_call.1} parent=1 // pred_region
      %27 = vsyncadd [#allocation6], 0
      %s28 = sshll.u32 %s1, 4
      %s29 = int_to_ptr.hbm [resolvable:$true] %s28
      %s30 = sshll.u32 [#allocation5], 4
      %s31 = int_to_ptr.vmem [resolvable:$true] %s30
      %36 = dma.hbm_to_vmem [thread:$0]  %s29, 512, %s31, [#allocation6], 128, 128, 8
    $region9: #{tpu_custom_call.1} parent=1 // pred_fallthru
      _
    // Predicated region
    $region10: #{tpu_custom_call.1} parent=1 // pred_check
      _
    $region11: #{tpu_custom_call.1} parent=1 // pred_check_branch
      %38 = sbr.rel (0) target = $region13
    $region12: #{tpu_custom_call.1} parent=1 // pred_region
      _
    $region13: #{tpu_custom_call.1} parent=1 // pred_fallthru
      _
    // Predicated region
    $region14: #{tpu_custom_call.1} parent=1 // pred_check
      _
    $region15: #{tpu_custom_call.1} parent=1 // pred_check_branch
      %40 = sbr.rel (0) target = $region17
    $region16: #{tpu_custom_call.1} parent=1 // pred_region
      %42 = vsyncadd [#allocation6], 0
      %s43 = sshll.u32 %s3, 4
      %s44 = int_to_ptr.hbm [resolvable:$true] %s43
      %s45 = sshll.u32 [#allocation7], 4
      %s46 = int_to_ptr.vmem [resolvable:$true] %s45
      %51 = dma.hbm_to_vmem [thread:$0]  %s44, 2048, %s46, [#allocation6], 128, 128, 8
    $region17: #{tpu_custom_call.1} parent=1 // pred_fallthru
      _
    // Predicated region
    $region18: #{tpu_custom_call.1} parent=1 // pred_check
      _
    $region19: #{tpu_custom_call.1} parent=1 // pred_check_branch
      %53 = sbr.rel (0) target = $region21
    $region20: #{tpu_custom_call.1} parent=1 // pred_region
      _
    $region21: #{tpu_custom_call.1} parent=1 // pred_fallthru
      _
    // Predicated region
    $region22: #{tpu_custom_call.1} parent=1 // pred_check
      _
    $region23: #{tpu_custom_call.1} parent=1 // pred_check_branch
      %55 = sbr.rel (0) target = $region25
    $region24: #{tpu_custom_call.1} parent=1 // pred_region
      %57 = dma.done [#allocation3], 128
    $region25: #{tpu_custom_call.1} parent=1 // pred_fallthru
      _
    // Predicated region
    $region26: #{tpu_custom_call.1} parent=1 // pred_check
      _
    $region27: #{tpu_custom_call.1} parent=1 // pred_check_branch
      %59 = sbr.rel (0) target = $region29
    $region28: #{tpu_custom_call.1} parent=1 // pred_region
      %61 = dma.done [#allocation6], 512
    $region29: #{tpu_custom_call.1} parent=1 // pred_fallthru
      _
    // Predicated region
    $region30: #{tpu_custom_call.1} parent=1 // pred_check
      _
    $region31: #{tpu_custom_call.1} parent=1 // pred_check_branch
      %63 = sbr.rel (0) target = $region33
    $region32: #{tpu_custom_call.1} parent=1 // pred_region
      %65 = dma.done [#allocation6], 2048
    $region33: #{tpu_custom_call.1} parent=1 // pred_fallthru
      _
    %v66 = vld [vmem:[#allocation2] sm:$0xff]
    %v67 = vld [vmem:[#allocation5] sm:$0xff]
    %v68 = vld [vmem:[#allocation5 + $0x8] sm:$0xff]
    %v69 = vld [vmem:[#allocation5 + $0x10] sm:$0xff]
    %v70 = vld [vmem:[#allocation5 + $0x18] sm:$0xff]
    %v71 = vld [vmem:[%s2] sm:$0x1]
    %v73 = vperm.slane %v71, 0
    %vm75 = vcmask 261120
    %v77 = vsel %vm75, %v66, 0
    %79 = vmatpush.msra.mxu0 0.0
    %80 = vmatpush.msra.mxu0 0.0
    %81 = vmatpush.msra.mxu0 0.0
    %82 = vmatpush.msra.mxu0 0.0
    %83 = vmatpush.msra.mxu0 0.0
    %84 = vmatpush.msra.mxu0 0.0
    %85 = vmatpush.msra.mxu0 0.0
    %86 = vmatpush.msra.mxu0 0.0
    %87 = vmatpush.msra.mxu0 0.0
    %88 = vmatpush.msra.mxu0 0.0
    %89 = vmatpush.msra.mxu0 0.0
    %90 = vmatpush.msra.mxu0 0.0
    %91 = vmatpush.msra.mxu0 %v70
    %92 = vmatpush.msra.mxu0 %v69
    %93 = vmatpush.msra.mxu0 %v68
    %94 = vmatpush.msra.mxu0 %v67
    %95 = vmatmul.f32.gmra.mxu0 %v77
    %v96 = vpop.f32.mrf.mxu0
    %v97 = vadd.f32 %v73, %v96
    %98 = vdwg.mxu0
    %v99 = vmax.f32 %v97, 0.0
    %v100 = vld [vmem:[#allocation7] sm:$0xff]
    %v101 = vld [vmem:[#allocation7 + $0x8] sm:$0xff]
    %v102 = vld [vmem:[#allocation7 + $0x10] sm:$0xff]
    %v103 = vld [vmem:[#allocation7 + $0x18] sm:$0xff]
    %v104 = vld [vmem:[#allocation7 + $0x20] sm:$0xff]
    %v105 = vld [vmem:[#allocation7 + $0x28] sm:$0xff]
    %v106 = vld [vmem:[#allocation7 + $0x30] sm:$0xff]
    %v107 = vld [vmem:[#allocation7 + $0x38] sm:$0xff]
    %v108 = vld [vmem:[#allocation7 + $0x40] sm:$0xff]
    %v109 = vld [vmem:[#allocation7 + $0x48] sm:$0xff]
    %v110 = vld [vmem:[#allocation7 + $0x50] sm:$0xff]
    %v111 = vld [vmem:[#allocation7 + $0x58] sm:$0xff]
    %v112 = vld [vmem:[#allocation7 + $0x60] sm:$0xff]
    %v113 = vld [vmem:[#allocation7 + $0x68] sm:$0xff]
    %v114 = vld [vmem:[#allocation7 + $0x70] sm:$0xff]
    %v115 = vld [vmem:[#allocation7 + $0x78] sm:$0xff]
    %v116 = vld [vmem:[%s4] sm:$0x1]
    %v118 = vperm.slane %v116, 0
    %120 = vmatpush.msra.mxu0 %v115
    %121 = vmatpush.msra.mxu0 %v114
    %122 = vmatpush.msra.mxu0 %v113
    %123 = vmatpush.msra.mxu0 %v112
    %124 = vmatpush.msra.mxu0 %v111
    %125 = vmatpush.msra.mxu0 %v110
    %126 = vmatpush.msra.mxu0 %v109
    %127 = vmatpush.msra.mxu0 %v108
    %128 = vmatpush.msra.mxu0 %v107
    %129 = vmatpush.msra.mxu0 %v106
    %130 = vmatpush.msra.mxu0 %v105
    %131 = vmatpush.msra.mxu0 %v104
    %132 = vmatpush.msra.mxu0 %v103
    %133 = vmatpush.msra.mxu0 %v102
    %134 = vmatpush.msra.mxu0 %v101
    %135 = vmatpush.msra.mxu0 %v100
    %136 = vmatmul.f32.gmra.mxu0 %v99
    %v137 = vpop.f32.mrf.mxu0
    %v138 = vadd.f32 %v118, %v137
    %139 = vdwg.mxu0
    %140 = vst [vmem:[#allocation8] sm:$0xff] %v138
    // Predicated region
    $region34: #{tpu_custom_call.1} parent=1 // pred_check
      _
    $region35: #{tpu_custom_call.1} parent=1 // pred_check_branch
      %142 = sbr.rel (0) target = $region37
    $region36: #{tpu_custom_call.1} parent=1 // pred_region
      %144 = vsyncadd [#allocation4], 0
      %s146 = sshll.u32 [#allocation8], 4
      %s147 = int_to_ptr.vmem [resolvable:$true] %s146
      %s148 = sshll.u32 %s5, 4
      %s149 = int_to_ptr.hbm [resolvable:$true] %s148
      %151 = dma.vmem_to_hbm [thread:$0]  %s147, 128, %s149, [#allocation4]
    $region37: #{tpu_custom_call.1} parent=1 // pred_fallthru
      _
    // Predicated region
    $region38: #{tpu_custom_call.1} parent=1 // pred_check
      _
    $region39: #{tpu_custom_call.1} parent=1 // pred_check_branch
      %153 = sbr.rel (0) target = $region41
    $region40: #{tpu_custom_call.1} parent=1 // pred_region
      %155 = dma.done [#allocation4], 128
    $region41: #{tpu_custom_call.1} parent=1 // pred_fallthru
      _
    %156 = vsyncpa [#allocation3], 1
    %157 = vsyncpa [#allocation6], 1
    %158 = vsyncpa [#allocation4], 1

</llo_original>
